<compile_context>
chip_gen: v7x
topology: tpu7x:2x2x1
jax: 0.10.0
libtpu: 0.0.40
codegen_flags: <defaults>
</compile_context>

<pallas_src>
import functools

import jax
import jax.numpy as jnp
from jax.experimental import pallas as pl
from jax.experimental.pallas import tpu as pltpu

IN_F = 11     # clinical features
H1 = 100      # linear1 out
H2 = 75       # linear2 out
OUT_F = 2     # linear3 out
H1_PAD = 128  # lane-dense padded hidden sizes
H2_PAD = 128


def mlp_kernel(x_ref, w1_ref, b1_ref, w2_ref, b2_ref, w3_ref, b3_ref, o_ref):
    # x arrives as f32; cast to bf16 in-register (free under MXU/store slots).
    x = x_ref[...].astype(jnp.bfloat16)          # (TM, 11)

    # linear1 (11 -> 128 padded) + ReLU, f32 accumulate / f32 epilogue
    h1 = jnp.dot(x, w1_ref[...], preferred_element_type=jnp.float32)
    h1 = jnp.maximum(h1 + b1_ref[...], 0.0)

    # linear2 (128 -> 128 padded) + ReLU
    h2 = jnp.dot(h1.astype(jnp.bfloat16), w2_ref[...],
                 preferred_element_type=jnp.float32)
    h2 = jnp.maximum(h2 + b2_ref[...], 0.0)

    # linear3 (128 -> 2) + sigmoid (EUP); output kept at its natural 2 lanes
    z = jnp.dot(h2.astype(jnp.bfloat16), w3_ref[...],
                preferred_element_type=jnp.float32)
    z = z + b3_ref[...]
    o_ref[...] = jax.nn.sigmoid(z).astype(o_ref.dtype)


def _cdiv(a, b):
    return -(-a // b)


def _round_up(n, m):
    return ((n + m - 1) // m) * m


def _choose_tile(B, tm):
    """Balanced batch tiles.

    - Single exact tile for small batches (block == full array extent, so any
      B is layout-legal and there are zero padded rows).
    - Otherwise split into max(cdiv(B, tm), 2) near-equal tiles rounded up to a
      16-row granule (bf16 sublane packing of the hidden activations); the
      minimum of 2 tiles keeps both v7x TensorCores busy via the "parallel"
      grid axis (no effect on single-TC v5e/v6e).
    """
    min_tiles = 2 if B >= 256 else 1
    n_tiles = max(_cdiv(B, tm), min_tiles)
    if n_tiles == 1:
        return B
    return _round_up(_cdiv(B, n_tiles), 16)


def init_params(key):
    """Deterministic init mimicking nn.Linear default (uniform +/- 1/sqrt(fan_in)).

    Weights stored transposed as (in_features, out_features) so y = x @ W + b.
    """
    def linear(key, fan_in, fan_out):
        kw, kb = jax.random.split(key)
        bound = 1.0 / jnp.sqrt(jnp.float32(fan_in))
        w = jax.random.uniform(kw, (fan_in, fan_out), jnp.float32, -bound, bound)
        b = jax.random.uniform(kb, (1, fan_out), jnp.float32, -bound, bound)
        return w, b

    k1, k2, k3 = jax.random.split(key, 3)
    w1, b1 = linear(k1, IN_F, H1)
    w2, b2 = linear(k2, H1, H2)
    w3, b3 = linear(k3, H2, OUT_F)
    return {"w1": w1, "b1": b1, "w2": w2, "b2": b2, "w3": w3, "b3": b3}


def pack_params(params):
    """Offline prep: zero-pad hidden dims to 128 and cast matmul weights to bf16.

    Zero-padded h1/h2 columns stay exactly 0 through bias(0)+ReLU and multiply
    zero rows of the next weight, so results are unchanged. Biases stay f32.
    """
    w1 = jnp.zeros((IN_F, H1_PAD), jnp.float32).at[:, :H1].set(params["w1"])
    b1 = jnp.zeros((1, H1_PAD), jnp.float32).at[:, :H1].set(params["b1"])
    w2 = jnp.zeros((H1_PAD, H2_PAD), jnp.float32).at[:H1, :H2].set(params["w2"])
    b2 = jnp.zeros((1, H2_PAD), jnp.float32).at[:, :H2].set(params["b2"])
    w3 = jnp.zeros((H2_PAD, OUT_F), jnp.float32).at[:H2, :].set(params["w3"])
    b3 = params["b3"].astype(jnp.float32)
    return {
        "w1": w1.astype(jnp.bfloat16), "b1": b1,
        "w2": w2.astype(jnp.bfloat16), "b2": b2,
        "w3": w3.astype(jnp.bfloat16), "b3": b3,
    }


@functools.partial(jax.jit, static_argnames=("tm",))
def heart_failure_forward(x, packed, *, tm=1024):
    """x: (B, 11) float32. packed: output of pack_params(). Returns (B, 2) f32."""
    B = x.shape[0]
    tm_eff = _choose_tile(B, tm)
    grid = (_cdiv(B, tm_eff),)

    const = lambda i: (0, 0)   # weights/biases: VMEM-resident, fetched once
    out = pl.pallas_call(
        mlp_kernel,
        out_shape=jax.ShapeDtypeStruct((B, OUT_F), jnp.float32),
        grid=grid,
        in_specs=[
            pl.BlockSpec((tm_eff, IN_F), lambda i: (i, 0)),   # streamed f32 x tile
            pl.BlockSpec((IN_F, H1_PAD), const),
            pl.BlockSpec((1, H1_PAD), const),
            pl.BlockSpec((H1_PAD, H2_PAD), const),
            pl.BlockSpec((1, H2_PAD), const),
            pl.BlockSpec((H2_PAD, OUT_F), const),
            pl.BlockSpec((1, OUT_F), const),
        ],
        out_specs=pl.BlockSpec((tm_eff, OUT_F), lambda i: (i, 0)),
        compiler_params=pltpu.CompilerParams(
            dimension_semantics=("parallel",),   # v7x: split batch tiles over 2 TCs
            vmem_limit_bytes=32 * 1024 * 1024,   # headroom for large tm on v5e
        ),
    )(x, packed["w1"], packed["b1"], packed["w2"], packed["b2"],
      packed["w3"], packed["b3"])
    return out


if __name__ == "__main__":
    key = jax.random.PRNGKey(0)
    k_params, k_x1, k_x2 = jax.random.split(key, 3)

    params = init_params(k_params)
    packed = pack_params(params)

    def ref_forward(x):  # plain-JAX f32 reference (unpadded params)
        h = jax.nn.relu(x @ params["w1"] + params["b1"])
        h = jax.nn.relu(h @ params["w2"] + params["b2"])
        return jax.nn.sigmoid(h @ params["w3"] + params["b3"])

    # Small batch (latency-bound, single exact tile, grid of 1).
    x_small = jax.random.normal(k_x1, (8, IN_F), jnp.float32)
    out_small = jax.block_until_ready(heart_failure_forward(x_small, packed))
    assert out_small.shape == (8, OUT_F)
    assert jnp.allclose(out_small, ref_forward(x_small), atol=2e-2), \
        "mismatch vs reference (small batch)"

    # Ragged larger batch: exercises the balanced multi-tile grid + masked tail.
    x_big = jax.random.normal(k_x2, (300, IN_F), jnp.float32)
    out_big = jax.block_until_ready(heart_failure_forward(x_big, packed, tm=256))
    assert out_big.shape == (300, OUT_F)
    assert jnp.allclose(out_big, ref_forward(x_big), atol=2e-2), \
        "mismatch vs reference (tiled ragged batch)"

    print("KERNEL_OK")
</pallas_src>

<mosaic_0001>
module attributes {stable_mosaic.version = 11 : i64} {
  func.func @mlp_kernel(%arg0: i32, %arg1: memref<8x11xf32, #tpu.memory_space<vmem>>, %arg2: memref<11x128xbf16, #tpu.memory_space<vmem>>, %arg3: memref<1x128xf32, #tpu.memory_space<vmem>>, %arg4: memref<128x128xbf16, #tpu.memory_space<vmem>>, %arg5: memref<1x128xf32, #tpu.memory_space<vmem>>, %arg6: memref<128x2xbf16, #tpu.memory_space<vmem>>, %arg7: memref<1x2xf32, #tpu.memory_space<vmem>>, %arg8: memref<8x2xf32, #tpu.memory_space<vmem>>) attributes {dimension_semantics = [#tpu.dimension_semantics<parallel>], iteration_bounds = array<i64: 1>, scalar_prefetch = 0 : i64, scratch_operands = 0 : i64, tpu.core_type = #tpu.core_type<tc>, window_params = [{transform_indices = @transform_0, window_bounds = array<i64: 8, 11>}, {pipeline_mode = #tpu.pipeline_mode<synchronous>, transform_indices = @transform_1, window_bounds = array<i64: 11, 128>}, {pipeline_mode = #tpu.pipeline_mode<synchronous>, transform_indices = @transform_2, window_bounds = array<i64: 1, 128>}, {pipeline_mode = #tpu.pipeline_mode<synchronous>, transform_indices = @transform_3, window_bounds = array<i64: 128, 128>}, {pipeline_mode = #tpu.pipeline_mode<synchronous>, transform_indices = @transform_4, window_bounds = array<i64: 1, 128>}, {pipeline_mode = #tpu.pipeline_mode<synchronous>, transform_indices = @transform_5, window_bounds = array<i64: 128, 2>}, {pipeline_mode = #tpu.pipeline_mode<synchronous>, transform_indices = @transform_6, window_bounds = array<i64: 1, 2>}, {transform_indices = @transform_7, window_bounds = array<i64: 8, 2>}]} {
    %c0 = arith.constant 0 : index
    %c0_0 = arith.constant 0 : index
    %0 = vector.load %arg1[%c0, %c0_0] : memref<8x11xf32, #tpu.memory_space<vmem>>, vector<8x11xf32>
    %1 = arith.truncf %0 : vector<8x11xf32> to vector<8x11xbf16>
    %c0_1 = arith.constant 0 : index
    %c0_2 = arith.constant 0 : index
    %2 = vector.load %arg2[%c0_1, %c0_2] : memref<11x128xbf16, #tpu.memory_space<vmem>>, vector<11x128xbf16>
    %cst = arith.constant dense<0.000000e+00> : vector<8x128xf32>
    %3 = tpu.matmul %1, %2, %cst {dimension_numbers = #tpu.dot_dimension_numbers<[1], [0], [0], [1], [0, 0, 1, 1], [], []>} : vector<8x11xbf16>, vector<11x128xbf16>, vector<8x128xf32> -> vector<8x128xf32>
    %c0_3 = arith.constant 0 : index
    %c0_4 = arith.constant 0 : index
    %4 = vector.load %arg3[%c0_3, %c0_4] : memref<1x128xf32, #tpu.memory_space<vmem>>, vector<1x128xf32>
    %5 = vector.broadcast %4 : vector<1x128xf32> to vector<8x128xf32>
    %6 = arith.addf %3, %5 : vector<8x128xf32>
    %cst_5 = arith.constant 0.000000e+00 : f32
    %7 = vector.broadcast %cst_5 : f32 to vector<8x128xf32>
    %8 = arith.maximumf %6, %7 : vector<8x128xf32>
    %9 = arith.truncf %8 : vector<8x128xf32> to vector<8x128xbf16>
    %c0_6 = arith.constant 0 : index
    %c0_7 = arith.constant 0 : index
    %10 = vector.load %arg4[%c0_6, %c0_7] : memref<128x128xbf16, #tpu.memory_space<vmem>>, vector<128x128xbf16>
    %cst_8 = arith.constant dense<0.000000e+00> : vector<8x128xf32>
    %11 = tpu.matmul %9, %10, %cst_8 {dimension_numbers = #tpu.dot_dimension_numbers<[1], [0], [0], [1], [0, 0, 1, 1], [], []>} : vector<8x128xbf16>, vector<128x128xbf16>, vector<8x128xf32> -> vector<8x128xf32>
    %c0_9 = arith.constant 0 : index
    %c0_10 = arith.constant 0 : index
    %12 = vector.load %arg5[%c0_9, %c0_10] : memref<1x128xf32, #tpu.memory_space<vmem>>, vector<1x128xf32>
    %13 = vector.broadcast %12 : vector<1x128xf32> to vector<8x128xf32>
    %14 = arith.addf %11, %13 : vector<8x128xf32>
    %cst_11 = arith.constant 0.000000e+00 : f32
    %15 = vector.broadcast %cst_11 : f32 to vector<8x128xf32>
    %16 = arith.maximumf %14, %15 : vector<8x128xf32>
    %17 = arith.truncf %16 : vector<8x128xf32> to vector<8x128xbf16>
    %c0_12 = arith.constant 0 : index
    %c0_13 = arith.constant 0 : index
    %18 = vector.load %arg6[%c0_12, %c0_13] : memref<128x2xbf16, #tpu.memory_space<vmem>>, vector<128x2xbf16>
    %cst_14 = arith.constant dense<0.000000e+00> : vector<8x2xf32>
    %19 = tpu.matmul %17, %18, %cst_14 {dimension_numbers = #tpu.dot_dimension_numbers<[1], [0], [0], [1], [0, 0, 1, 1], [], []>} : vector<8x128xbf16>, vector<128x2xbf16>, vector<8x2xf32> -> vector<8x2xf32>
    %c0_15 = arith.constant 0 : index
    %c0_16 = arith.constant 0 : index
    %20 = vector.load %arg7[%c0_15, %c0_16] : memref<1x2xf32, #tpu.memory_space<vmem>>, vector<1x2xf32>
    %21 = vector.broadcast %20 : vector<1x2xf32> to vector<8x2xf32>
    %22 = arith.addf %19, %21 : vector<8x2xf32>
    %23 = arith.negf %22 : vector<8x2xf32>
    %24 = math.exp %23 : vector<8x2xf32>
    %cst_17 = arith.constant 1.000000e+00 : f32
    %25 = vector.broadcast %cst_17 : f32 to vector<8x2xf32>
    %26 = arith.addf %25, %24 : vector<8x2xf32>
    %27 = arith.divf %25, %26 : vector<8x2xf32>
    %c0_18 = arith.constant 0 : index
    %c0_19 = arith.constant 0 : index
    %28 = vector.load %arg8[%c0_18, %c0_19] : memref<8x2xf32, #tpu.memory_space<vmem>>, vector<8x2xf32>
    tpu.vector_store %arg8[%c0_18, %c0_19], %27 {strides = array<i32>} : memref<8x2xf32, #tpu.memory_space<vmem>>, vector<8x2xf32>,
    return
  }
  func.func @transform_0(%arg0: i32) -> (i32, i32) {
    %c0_i32 = arith.constant 0 : i32
    %c0_i32_0 = arith.constant 0 : i32
    return %arg0, %c0_i32 : i32, i32
  }
  func.func @transform_1(%arg0: i32) -> (i32, i32) {
    %c0_i32 = arith.constant 0 : i32
    %c0_i32_0 = arith.constant 0 : i32
    %c0_i32_1 = arith.constant 0 : i32
    return %c0_i32, %c0_i32_0 : i32, i32
  }
  func.func @transform_2(%arg0: i32) -> (i32, i32) {
    %c0_i32 = arith.constant 0 : i32
    %c0_i32_0 = arith.constant 0 : i32
    %c0_i32_1 = arith.constant 0 : i32
    return %c0_i32, %c0_i32_0 : i32, i32
  }
  func.func @transform_3(%arg0: i32) -> (i32, i32) {
    %c0_i32 = arith.constant 0 : i32
    %c0_i32_0 = arith.constant 0 : i32
    %c0_i32_1 = arith.constant 0 : i32
    return %c0_i32, %c0_i32_0 : i32, i32
  }
  func.func @transform_4(%arg0: i32) -> (i32, i32) {
    %c0_i32 = arith.constant 0 : i32
    %c0_i32_0 = arith.constant 0 : i32
    %c0_i32_1 = arith.constant 0 : i32
    return %c0_i32, %c0_i32_0 : i32, i32
  }
  func.func @transform_5(%arg0: i32) -> (i32, i32) {
    %c0_i32 = arith.constant 0 : i32
    %c0_i32_0 = arith.constant 0 : i32
    %c0_i32_1 = arith.constant 0 : i32
    return %c0_i32, %c0_i32_0 : i32, i32
  }
  func.func @transform_6(%arg0: i32) -> (i32, i32) {
    %c0_i32 = arith.constant 0 : i32
    %c0_i32_0 = arith.constant 0 : i32
    %c0_i32_1 = arith.constant 0 : i32
    return %c0_i32, %c0_i32_0 : i32, i32
  }
  func.func @transform_7(%arg0: i32) -> (i32, i32) {
    %c0_i32 = arith.constant 0 : i32
    %c0_i32_0 = arith.constant 0 : i32
    return %arg0, %c0_i32 : i32, i32
  }
}

</mosaic_0001>

<llo_original>
// kernel: heart_failure_forward.1
$region0: #{heart_failure_forward.1}
  #allocation0 [shape = 'u32[]', space=smem, size = 0x4, offset = 0x4, fixed_abs, tag = 'smem constant byte address 0x4 - core index']
  #allocation1 [shape = 'u32[144,128]{1,0:T(1,128)}', space=vmem, size = 0x12000, scoped, tag = 'internal scratch']
  %s0 = inlined_call_operand.vmem [shape: f32[8,11], index: 0, kind: input, shape index: {}]
  %s1 = inlined_call_operand.vmem [shape: bf16[11,128], index: 1, kind: input, shape index: {}]
  %s2 = inlined_call_operand.vmem [shape: f32[1,128], index: 2, kind: input, shape index: {}]
  %s3 = inlined_call_operand.vmem [shape: bf16[128,128], index: 3, kind: input, shape index: {}]
  %s4 = inlined_call_operand.vmem [shape: f32[1,128], index: 4, kind: input, shape index: {}]
  %s5 = inlined_call_operand.vmem [shape: bf16[128,2], index: 5, kind: input, shape index: {}]
  %s6 = inlined_call_operand.vmem [shape: f32[1,2], index: 6, kind: input, shape index: {}]
  %s7 = inlined_call_operand.vmem [shape: f32[8,2], index: 7, kind: output, shape index: {}]
  %s8 = sld [smem:[#allocation0]]
  $region38: #{heart_failure_forward.1} parent=0
    _
  %s10 = ssub.s32 1, %s8
  %s11 = scalar_select 0, %s10, %s8
  // Predicated region
  $region2: #{heart_failure_forward.1} parent=0 // pred_check
    _
  $region3: #{heart_failure_forward.1} parent=0 // pred_check_branch
    %13 = sbr.rel (0) target = $region5
  $region4: #{heart_failure_forward.1} parent=0 // pred_region
    _
  $region5: #{heart_failure_forward.1} parent=0 // pred_fallthru
    _
  // Predicated region
  $region6: #{heart_failure_forward.1} parent=0 // pred_check
    _
  $region7: #{heart_failure_forward.1} parent=0 // pred_check_branch
    %15 = sbr.rel (0) target = $region9
  $region8: #{heart_failure_forward.1} parent=0 // pred_region
    _
  $region9: #{heart_failure_forward.1} parent=0 // pred_fallthru
    _
  // Predicated region
  $region10: #{heart_failure_forward.1} parent=0 // pred_check
    _
  $region11: #{heart_failure_forward.1} parent=0 // pred_check_branch
    %17 = sbr.rel (0) target = $region13
  $region12: #{heart_failure_forward.1} parent=0 // pred_region
    _
  $region13: #{heart_failure_forward.1} parent=0 // pred_fallthru
    _
  // Predicated region
  $region14: #{heart_failure_forward.1} parent=0 // pred_check
    _
  $region15: #{heart_failure_forward.1} parent=0 // pred_check_branch
    %19 = sbr.rel (0) target = $region17
  $region16: #{heart_failure_forward.1} parent=0 // pred_region
    _
  $region17: #{heart_failure_forward.1} parent=0 // pred_fallthru
    _
  // Predicated region
  $region18: #{heart_failure_forward.1} parent=0 // pred_check
    _
  $region19: #{heart_failure_forward.1} parent=0 // pred_check_branch
    %21 = sbr.rel (0) target = $region21
  $region20: #{heart_failure_forward.1} parent=0 // pred_region
    _
  $region21: #{heart_failure_forward.1} parent=0 // pred_fallthru
    _
  // Predicated region
  $region22: #{heart_failure_forward.1} parent=0 // pred_check
    _
  $region23: #{heart_failure_forward.1} parent=0 // pred_check_branch
    %23 = sbr.rel (0) target = $region25
  $region24: #{heart_failure_forward.1} parent=0 // pred_region
    _
  $region25: #{heart_failure_forward.1} parent=0 // pred_fallthru
    _
  // Predicated region
  $region26: #{heart_failure_forward.1} parent=0 // pred_check
    _
  $region27: #{heart_failure_forward.1} parent=0 // pred_check_branch
    %25 = sbr.rel (0) target = $region29
  $region28: #{heart_failure_forward.1} parent=0 // pred_region
    _
  $region29: #{heart_failure_forward.1} parent=0 // pred_fallthru
    _
  %v27 = vld [vmem:[%s0] sm:$0xff]
  %v28 = vpack.c.bf16 %v27, %v27
  %v29 = vld [vmem:[%s1] sm:$0xf]
  %v30 = vld [vmem:[%s1 + $0x4] sm:$0x3]
  %v31 = vld [vmem:[%s2] sm:$0x1]
  %v33 = vlaneseq
  %v34 = vshrl.u32 %v33, 7
  %v35 = vsub.s32 0, %v34
  %v36 = vrot.slane %v31, %v35
  %v40 = vunpack.c.l.b16 %v29
  %v41 = vunpack.c.l.b16 %v30
  %v42 = vpack.c.b16 %v41, %v40
  %vm43 = vcmask 89088
  %v45 = vsel %vm43, %v28, 0
  %vm47 = vcmask 1044480
  %vm48 = vcmask 1045504
  %v49 = vsel %vm47, 4294967295, 65535
  %v50 = vsel %vm48, %v49, 0
  %v52 = vand.u32 %v42, %v50
  %54 = vmatprep.subr.bf16.mxu0 0
  %55 = vmatpush1.bf16.msra.mxu0 %v52
  %56 = vmatprep.subr.bf16.mxu0 0
  %57 = vmatpush1.bf16.msra.mxu0 0
  %58 = vmatprep.subr.bf16.mxu0 0
  %59 = vmatpush1.bf16.msra.mxu0 0
  %60 = vmatprep.subr.bf16.mxu0 0
  %61 = vmatpush1.bf16.msra.mxu0 0
  %62 = vmatprep.subr.bf16.mxu0 0
  %63 = vmatpush1.bf16.msra.mxu0 0
  %64 = vmatprep.subr.bf16.mxu0 0
  %65 = vmatpush1.bf16.msra.mxu0 0
  %66 = vmatprep.subr.bf16.mxu0 0
  %67 = vmatpush1.bf16.msra.mxu0 0
  %68 = vmatprep.subr.bf16.mxu0 0
  %69 = vmatpush1.bf16.msra.mxu0 0
  %70 = vmatprep.subr.bf16.mxu0 0
  %71 = vmatpush1.bf16.msra.mxu0 0
  %72 = vmatprep.subr.bf16.mxu0 0
  %73 = vmatpush1.bf16.msra.mxu0 0
  %74 = vmatprep.subr.bf16.mxu0 0
  %75 = vmatpush1.bf16.msra.mxu0 0
  %76 = vmatprep.subr.bf16.mxu0 0
  %77 = vmatpush1.bf16.msra.mxu0 0
  %78 = vmatprep.subr.bf16.mxu0 0
  %79 = vmatpush1.bf16.msra.mxu0 0
  %80 = vmatprep.subr.bf16.mxu0 0
  %81 = vmatpush1.bf16.msra.mxu0 0
  %82 = vmatprep.subr.bf16.mxu0 0
  %83 = vmatpush1.bf16.msra.mxu0 0
  %84 = vmatprep.subr.bf16.mxu0 0
  %85 = vmatpush1.bf16.msra.mxu0 0
  %86 = vmatprep.mubr.bf16.mxu0 0
  %87 = vmatmul.mubr.bf16.gmra.mrb[0].mxu0 %v45
  %v88 = vpop.f32.mrb[0].mxu0
  %v89 = vadd.f32 %v36, %v88
  %v90 = vpop.f32.mrb[0].mxu0
  %v91 = vpop.f32.mrb[0].mxu0
  %v92 = vpop.f32.mrb[0].mxu0
  %93 = vdwg.mxu0
  %v94 = vmax.f32 %v89, 0.0
  %v95 = vpack.c.bf16 %v94, %v94
  %v96 = vld [vmem:[%s3] sm:$0xf]
  %v97 = vld [vmem:[%s3 + $0x4] sm:$0xf]
  %v98 = vld [vmem:[%s3 + $0x8] sm:$0xf]
  %v99 = vld [vmem:[%s3 + $0xc] sm:$0xf]
  %v100 = vld [vmem:[%s3 + $0x10] sm:$0xf]
  %v101 = vld [vmem:[%s3 + $0x14] sm:$0xf]
  %v102 = vld [vmem:[%s3 + $0x18] sm:$0xf]
  %v103 = vld [vmem:[%s3 + $0x1c] sm:$0xf]
  %v104 = vld [vmem:[%s3 + $0x20] sm:$0xf]
  %v105 = vld [vmem:[%s3 + $0x24] sm:$0xf]
  %v106 = vld [vmem:[%s3 + $0x28] sm:$0xf]
  %v107 = vld [vmem:[%s3 + $0x2c] sm:$0xf]
  %v108 = vld [vmem:[%s3 + $0x30] sm:$0xf]
  %v109 = vld [vmem:[%s3 + $0x34] sm:$0xf]
  %v110 = vld [vmem:[%s3 + $0x38] sm:$0xf]
  %v111 = vld [vmem:[%s3 + $0x3c] sm:$0xf]
  %v112 = vld [vmem:[%s4] sm:$0x1]
  %v114 = vlaneseq
  %v115 = vshrl.u32 %v114, 7
  %v116 = vsub.s32 0, %v115
  %v117 = vrot.slane %v112, %v116
  %v135 = vunpack.c.l.b16 %v96
  %v136 = vunpack.c.l.b16 %v97
  %v137 = vunpack.c.l.b16 %v98
  %v138 = vunpack.c.l.b16 %v99
  %v139 = vunpack.c.l.b16 %v100
  %v140 = vunpack.c.l.b16 %v101
  %v141 = vunpack.c.l.b16 %v102
  %v142 = vunpack.c.l.b16 %v103
  %v143 = vunpack.c.l.b16 %v104
  %v144 = vunpack.c.l.b16 %v105
  %v145 = vunpack.c.l.b16 %v106
  %v146 = vunpack.c.l.b16 %v107
  %v147 = vunpack.c.l.b16 %v108
  %v148 = vunpack.c.l.b16 %v109
  %v149 = vunpack.c.l.b16 %v110
  %v150 = vunpack.c.l.b16 %v111
  %v151 = vpack.c.b16 %v136, %v135
  %v152 = vpack.c.b16 %v138, %v137
  %v153 = vpack.c.b16 %v140, %v139
  %v154 = vpack.c.b16 %v142, %v141
  %v155 = vpack.c.b16 %v144, %v143
  %v156 = vpack.c.b16 %v146, %v145
  %v157 = vpack.c.b16 %v148, %v147
  %v158 = vpack.c.b16 %v150, %v149
  %167 = vmatprep.subr.bf16.mxu0 0
  %168 = vmatpush1.bf16.msra.mxu0 %v151
  %169 = vmatprep.subr.bf16.mxu0 0
  %170 = vmatpush1.bf16.msra.mxu0 %v152
  %171 = vmatprep.subr.bf16.mxu0 0
  %172 = vmatpush1.bf16.msra.mxu0 %v153
  %173 = vmatprep.subr.bf16.mxu0 0
  %174 = vmatpush1.bf16.msra.mxu0 %v154
  %175 = vmatprep.subr.bf16.mxu0 0
  %176 = vmatpush1.bf16.msra.mxu0 %v155
  %177 = vmatprep.subr.bf16.mxu0 0
  %178 = vmatpush1.bf16.msra.mxu0 %v156
  %179 = vmatprep.subr.bf16.mxu0 0
  %180 = vmatpush1.bf16.msra.mxu0 %v157
  %181 = vmatprep.subr.bf16.mxu0 0
  %182 = vmatpush1.bf16.msra.mxu0 %v158
  %183 = vmatprep.subr.bf16.mxu0 0
  %184 = vmatpush1.bf16.msra.mxu0 0
  %185 = vmatprep.subr.bf16.mxu0 0
  %186 = vmatpush1.bf16.msra.mxu0 0
  %187 = vmatprep.subr.bf16.mxu0 0
  %188 = vmatpush1.bf16.msra.mxu0 0
  %189 = vmatprep.subr.bf16.mxu0 0
  %190 = vmatpush1.bf16.msra.mxu0 0
  %191 = vmatprep.subr.bf16.mxu0 0
  %192 = vmatpush1.bf16.msra.mxu0 0
  %193 = vmatprep.subr.bf16.mxu0 0
  %194 = vmatpush1.bf16.msra.mxu0 0
  %195 = vmatprep.subr.bf16.mxu0 0
  %196 = vmatpush1.bf16.msra.mxu0 0
  %197 = vmatprep.subr.bf16.mxu0 0
  %198 = vmatpush1.bf16.msra.mxu0 0
  %199 = vmatprep.mubr.bf16.mxu0 0
  %200 = vmatmul.mubr.bf16.gmra.mrb[0].mxu0 %v95
  %v201 = vpop.f32.mrb[0].mxu0
  %v202 = vadd.f32 %v117, %v201
  %v203 = vpop.f32.mrb[0].mxu0
  %v204 = vpop.f32.mrb[0].mxu0
  %v205 = vpop.f32.mrb[0].mxu0
  %206 = vdwg.mxu0
  %v207 = vmax.f32 %v202, 0.0
  %v208 = vpack.c.bf16 %v207, %v207
  %v209 = vld [vmem:[%s5] sm:$0xf]
  %v210 = vld [vmem:[%s5 + $0x4] sm:$0xf]
  %v211 = vld [vmem:[%s5 + $0x8] sm:$0xf]
  %v212 = vld [vmem:[%s5 + $0xc] sm:$0xf]
  %v213 = vld [vmem:[%s5 + $0x10] sm:$0xf]
  %v214 = vld [vmem:[%s5 + $0x14] sm:$0xf]
  %v215 = vld [vmem:[%s5 + $0x18] sm:$0xf]
  %v216 = vld [vmem:[%s5 + $0x1c] sm:$0xf]
  %v217 = vld [vmem:[%s5 + $0x20] sm:$0xf]
  %v218 = vld [vmem:[%s5 + $0x24] sm:$0xf]
  %v219 = vld [vmem:[%s5 + $0x28] sm:$0xf]
  %v220 = vld [vmem:[%s5 + $0x2c] sm:$0xf]
  %v221 = vld [vmem:[%s5 + $0x30] sm:$0xf]
  %v222 = vld [vmem:[%s5 + $0x34] sm:$0xf]
  %v223 = vld [vmem:[%s5 + $0x38] sm:$0xf]
  %v224 = vld [vmem:[%s5 + $0x3c] sm:$0xf]
  %v225 = vld [vmem:[%s6] sm:$0x1]
  %v227 = vlaneseq
  %v228 = vshrl.u32 %v227, 7
  %v229 = vsub.s32 0, %v228
  %v230 = vrot.slane %v225, %v229
  %v248 = vunpack.c.l.b16 %v209
  %v249 = vunpack.c.l.b16 %v210
  %v250 = vunpack.c.l.b16 %v211
  %v251 = vunpack.c.l.b16 %v212
  %v252 = vunpack.c.l.b16 %v213
  %v253 = vunpack.c.l.b16 %v214
  %v254 = vunpack.c.l.b16 %v215
  %v255 = vunpack.c.l.b16 %v216
  %v256 = vunpack.c.l.b16 %v217
  %v257 = vunpack.c.l.b16 %v218
  %v258 = vunpack.c.l.b16 %v219
  %v259 = vunpack.c.l.b16 %v220
  %v260 = vunpack.c.l.b16 %v221
  %v261 = vunpack.c.l.b16 %v222
  %v262 = vunpack.c.l.b16 %v223
  %v263 = vunpack.c.l.b16 %v224
  %v264 = vpack.c.b16 %v249, %v248
  %v265 = vpack.c.b16 %v251, %v250
  %v266 = vpack.c.b16 %v253, %v252
  %v267 = vpack.c.b16 %v255, %v254
  %v268 = vpack.c.b16 %v257, %v256
  %v269 = vpack.c.b16 %v259, %v258
  %v270 = vpack.c.b16 %v261, %v260
  %v271 = vpack.c.b16 %v263, %v262
  %280 = vmatprep.subr.bf16.mxu0 0
  %281 = vmatpush1.bf16.msra.mxu0 %v264
  %282 = vmatprep.subr.bf16.mxu0 0
  %283 = vmatpush1.bf16.msra.mxu0 %v265
  %284 = vmatprep.subr.bf16.mxu0 0
  %285 = vmatpush1.bf16.msra.mxu0 %v266
  %286 = vmatprep.subr.bf16.mxu0 0
  %287 = vmatpush1.bf16.msra.mxu0 %v267
  %288 = vmatprep.subr.bf16.mxu0 0
  %289 = vmatpush1.bf16.msra.mxu0 %v268
  %290 = vmatprep.subr.bf16.mxu0 0
  %291 = vmatpush1.bf16.msra.mxu0 %v269
  %292 = vmatprep.subr.bf16.mxu0 0
  %293 = vmatpush1.bf16.msra.mxu0 %v270
  %294 = vmatprep.subr.bf16.mxu0 0
  %295 = vmatpush1.bf16.msra.mxu0 %v271
  %296 = vmatprep.subr.bf16.mxu0 0
  %297 = vmatpush1.bf16.msra.mxu0 0
  %298 = vmatprep.subr.bf16.mxu0 0
  %299 = vmatpush1.bf16.msra.mxu0 0
  %300 = vmatprep.subr.bf16.mxu0 0
  %301 = vmatpush1.bf16.msra.mxu0 0
  %302 = vmatprep.subr.bf16.mxu0 0
  %303 = vmatpush1.bf16.msra.mxu0 0
  %304 = vmatprep.subr.bf16.mxu0 0
  %305 = vmatpush1.bf16.msra.mxu0 0
  %306 = vmatprep.subr.bf16.mxu0 0
  %307 = vmatpush1.bf16.msra.mxu0 0
  %308 = vmatprep.subr.bf16.mxu0 0
  %309 = vmatpush1.bf16.msra.mxu0 0
  %310 = vmatprep.subr.bf16.mxu0 0
  %311 = vmatpush1.bf16.msra.mxu0 0
  %312 = vmatprep.mubr.bf16.mxu0 0
  %313 = vmatmul.mubr.bf16.gmra.mrb[0].mxu0 %v208
  %v314 = vpop.f32.mrb[0].mxu0
  %v315 = vadd.f32 %v230, %v314
  %v316 = vpop.f32.mrb[0].mxu0
  %v317 = vpop.f32.mrb[0].mxu0
  %v318 = vpop.f32.mrb[0].mxu0
  %319 = vdwg.mxu0
  %v320 = vxor.u32 %v315, 2147483648
  %v321 = vmul.f32 %v320, 1.442695
  %v322 = vpow.pop %v321
  %v323 = vadd.f32 %v322, 1.0
  %v324 = vrcp.pop %v323
  %v325 = vmul.f32 1.0, %v324
  %vm326 = vcmask 15360
  %327 = vst.msk [vmem:[%s7] sm:$0xff] %vm326, %v325
  // Predicated region
  $region30: #{heart_failure_forward.1} parent=0 // pred_check
    _
  $region31: #{heart_failure_forward.1} parent=0 // pred_check_branch
    %329 = sbr.rel (0) target = $region33
  $region32: #{heart_failure_forward.1} parent=0 // pred_region
    _
  $region33: #{heart_failure_forward.1} parent=0 // pred_fallthru
    _
  // Predicated region
  $region34: #{heart_failure_forward.1} parent=0 // pred_check
    _
  $region35: #{heart_failure_forward.1} parent=0 // pred_check_branch
    %331 = sbr.rel (0) target = $region37
  $region36: #{heart_failure_forward.1} parent=0 // pred_region
    _
  $region37: #{heart_failure_forward.1} parent=0 // pred_fallthru
    _

</llo_original>
